<compile_context>
chip_gen: v5e
topology: v5e:2x2
jax: 0.10.0
libtpu: 0.0.40
codegen_flags: <defaults>
</compile_context>

<pallas_src>
import jax
import jax.numpy as jnp
from jax import lax
from jax.experimental import pallas as pl
from jax.experimental.pallas import tpu as pltpu

# ----------------------------- problem sizes -------------------------------
B, C_IN, HH, WW = 2, 4, 16, 16      # input images (NCHW at the wrapper boundary)
C_MID = 8                           # conv output channels
FEAT = 32                           # encoder feature dim
NUM_CLASSES = 10                    # classification head output
KH = KW = 3                         # conv kernel
HW = HH * WW                        # 256 spatial positions per image
LANES = B * HW                      # 512 lanes = batch * spatial

assert WW & (WW - 1) == 0 and HW & (HW - 1) == 0, "halo masks assume powers of two"
W_SHIFT = WW.bit_length() - 1       # lane-within-image // W  via right shift
HW_SHIFT = HW.bit_length() - 1      # lane // HW (image index) via right shift

TAP_STRIDE = 8                      # rows per tap in the im2col slab (sublane tile)
N_TAPS = KH * KW                    # 9
K_PAD = (N_TAPS + 1) * TAP_STRIDE   # 80: 9 taps + 1 bias block, all tile-aligned
BIAS_COL = N_TAPS * TAP_STRIDE      # 72: the ones-row / conv-bias column

PARAM_ROWS = 24                     # 17 used rows padded to a sublane multiple
PARAM_LANES = 128
W_CONV_ROW, W_FOLD_ROW, B_FOLD_ROW = 0, C_MID, 2 * C_MID


# --------------------------- Pallas kernel body -----------------------------
def fused_forward_kernel(x_ref, p_ref, out_ref, im2col_ref):
    """Whole forward pass, whole batch, one grid step.

    x_ref      : (8, B*HW)        rows 0..3 = input channels, rows 4..7 = zeros
    p_ref      : (24, 128)        packed param slab (see prepare_kernel_params)
    out_ref    : (B, NUM_CLASSES) logits
    im2col_ref : (K_PAD, B*HW)    VMEM scratch for the im2col slab
    """
    x = x_ref[...]                                        # (8, 512), lane-dense

    # Per-lane (h, w) position INSIDE each 256-lane image segment (halo masking).
    lane = lax.broadcasted_iota(jnp.int32, x.shape, 1)
    pos = jnp.bitwise_and(lane, HW - 1)                   # lane within its image
    h_idx = jnp.right_shift(pos, W_SHIFT)                 # pos // W
    w_idx = jnp.bitwise_and(pos, WW - 1)                  # pos %  W

    # 9 lane-rolled + halo-masked copies of the image slab, written tap-aligned
    # into the im2col scratch.  slab_k[c, l] = x[c, l + dh*W + dw] or 0 at halos;
    # cross-image wrap-around lanes are always halo-masked (valid taps never cross
    # a 256-lane image boundary).
    for kh in range(KH):
        for kw in range(KW):
            k = kh * KW + kw
            dh, dw = kh - 1, kw - 1
            delta = dh * WW + dw
            if delta == 0:
                sh = x
            else:
                sh = pltpu.roll(x, shift=(-delta) % LANES, axis=1)
            conds = []
            if dh < 0:
                conds.append(h_idx >= -dh)
            if dh > 0:
                conds.append(h_idx < HH - dh)
            if dw < 0:
                conds.append(w_idx >= -dw)
            if dw > 0:
                conds.append(w_idx < WW - dw)
            if conds:
                m = conds[0]
                for c in conds[1:]:
                    m = jnp.logical_and(m, c)
                sh = jnp.where(m, sh, 0.0)
            im2col_ref[k * TAP_STRIDE:(k + 1) * TAP_STRIDE, :] = sh

    # Bias block: row 0 = ones (conv bias tap), rows 1..7 = zeros (tile padding).
    bias_blk = (lax.broadcasted_iota(jnp.int32, (TAP_STRIDE, LANES), 0) == 0)
    im2col_ref[BIAS_COL:BIAS_COL + TAP_STRIDE, :] = bias_blk.astype(jnp.float32)

    # Conv (all 9 taps, both images) + bias as ONE MXU contraction, then ReLU.
    w_conv_aug = p_ref[W_CONV_ROW:W_CONV_ROW + C_MID, 0:K_PAD]      # (8, 80)
    act = jnp.maximum(
        jnp.dot(w_conv_aug, im2col_ref[...],
                preferred_element_type=jnp.float32), 0.0)           # (8, 512)

    # Pool both images with one matmul: 0/1 selector over the batch*spatial lanes
    # (the 1/(H*W) mean factor is folded into w_fold by the wrapper).
    img = jnp.right_shift(lax.broadcasted_iota(jnp.int32, (B, LANES), 1), HW_SHIFT)
    row = lax.broadcasted_iota(jnp.int32, (B, LANES), 0)
    sel = (img == row).astype(jnp.float32)                           # (B, 512)
    pooled = lax.dot_general(sel, act, (((1,), (1,)), ((), ())),
                             preferred_element_type=jnp.float32)     # (B, C_MID)

    # Folded encoder-projection + classification head, single (2,10) store.
    w_fold = p_ref[W_FOLD_ROW:W_FOLD_ROW + C_MID, 0:NUM_CLASSES]     # (8, 10)
    b_fold = p_ref[B_FOLD_ROW:B_FOLD_ROW + 1, 0:NUM_CLASSES]         # (1, 10)
    logits = jnp.dot(pooled, w_fold,
                     preferred_element_type=jnp.float32) + b_fold    # (B, 10)
    out_ref[...] = logits


# ------------------------------- wrapper ------------------------------------
def fused_forward(x8, param_slab):
    return pl.pallas_call(
        fused_forward_kernel,
        out_shape=jax.ShapeDtypeStruct((B, NUM_CLASSES), jnp.float32),
        grid_spec=pltpu.PrefetchScalarGridSpec(
            num_scalar_prefetch=0,
            grid=(1,),                                    # whole problem in one step
            in_specs=[
                pl.BlockSpec((TAP_STRIDE, LANES), lambda i: (0, 0)),
                pl.BlockSpec((PARAM_ROWS, PARAM_LANES), lambda i: (0, 0)),
            ],
            out_specs=pl.BlockSpec((B, NUM_CLASSES), lambda i: (0, 0)),
            scratch_shapes=[pltpu.VMEM((K_PAD, LANES), jnp.float32)],
        ),
        compiler_params=pltpu.CompilerParams(
            dimension_semantics=("arbitrary",)),          # no megacore split of B=2
    )(x8, param_slab)


def init_params(key):
    k = jax.random.split(key, 6)
    scale = 0.1
    return {
        # PyTorch-style OIHW conv weight + math-layout (in, out) linears.
        "w_conv": scale * jax.random.normal(k[0], (C_MID, C_IN, KH, KW), jnp.float32),
        "b_conv": scale * jax.random.normal(k[1], (1, C_MID), jnp.float32),
        "w_proj": scale * jax.random.normal(k[2], (C_MID, FEAT), jnp.float32),
        "b_proj": scale * jax.random.normal(k[3], (1, FEAT), jnp.float32),
        "w_head": scale * jax.random.normal(k[4], (FEAT, NUM_CLASSES), jnp.float32),
        "b_head": scale * jax.random.normal(k[5], (1, NUM_CLASSES), jnp.float32),
    }


def prepare_kernel_params(params):
    """One-time (outside jit) weight re-layout + algebraic folding into ONE slab."""
    # conv (O, I, KH, KW) -> im2col columns: col k*8 + i = tap k, channel i.
    w_tap = jnp.transpose(params["w_conv"], (0, 2, 3, 1)).reshape(C_MID, N_TAPS, C_IN)
    w_tap_pad = jnp.zeros((C_MID, N_TAPS, TAP_STRIDE), jnp.float32)
    w_tap_pad = w_tap_pad.at[:, :, :C_IN].set(w_tap)
    w_conv_cols = w_tap_pad.reshape(C_MID, N_TAPS * TAP_STRIDE)       # (8, 72)

    # Fold Linear(8->32) and Linear(32->10) (no nonlinearity between them) and the
    # 1/(H*W) mean-pool scale into a single (8,10) weight / (1,10) bias.
    w_fold = (params["w_proj"] @ params["w_head"]) * (1.0 / HW)       # (8, 10)
    b_fold = params["b_proj"] @ params["w_head"] + params["b_head"]   # (1, 10)

    slab = jnp.zeros((PARAM_ROWS, PARAM_LANES), jnp.float32)
    slab = slab.at[W_CONV_ROW:W_CONV_ROW + C_MID, 0:N_TAPS * TAP_STRIDE].set(w_conv_cols)
    slab = slab.at[W_CONV_ROW:W_CONV_ROW + C_MID, BIAS_COL].set(params["b_conv"][0])
    slab = slab.at[W_FOLD_ROW:W_FOLD_ROW + C_MID, 0:NUM_CLASSES].set(w_fold)
    slab = slab.at[B_FOLD_ROW, 0:NUM_CLASSES].set(b_fold[0])
    return slab


@jax.jit
def image_classifier_forward(x_nchw, param_slab):
    """ImageClassifier.forward: features = image_encoder(x); outputs = head(features)."""
    # Tiny wrapper glue: NCHW -> (C, B, H, W) -> (C, B*HW), zero-padded to 8 sublanes.
    x_cl = jnp.transpose(x_nchw.astype(jnp.float32), (1, 0, 2, 3)).reshape(C_IN, LANES)
    x8 = jnp.zeros((TAP_STRIDE, LANES), jnp.float32).at[:C_IN, :].set(x_cl)
    return fused_forward(x8, param_slab)


def reference_forward(x_nchw, params):
    """Pure-JAX reference (un-folded) for correctness checking."""
    conv = lax.conv_general_dilated(
        x_nchw.astype(jnp.float32), params["w_conv"],
        window_strides=(1, 1), padding="SAME",
        dimension_numbers=("NCHW", "OIHW", "NCHW"))
    conv = conv + params["b_conv"].reshape(1, C_MID, 1, 1)
    relu = jnp.maximum(conv, 0.0)
    pooled = jnp.mean(relu, axis=(2, 3))                  # (B, C_MID)
    feat = pooled @ params["w_proj"] + params["b_proj"]
    return feat @ params["w_head"] + params["b_head"]


if __name__ == "__main__":
    key = jax.random.PRNGKey(0)
    k_x, k_p = jax.random.split(key)
    x = jax.random.normal(k_x, (B, C_IN, HH, WW), jnp.float32)
    params = init_params(k_p)
    param_slab = prepare_kernel_params(params)

    logits = image_classifier_forward(x, param_slab)
    jax.block_until_ready(logits)

    ref = reference_forward(x, params)
    assert logits.shape == (B, NUM_CLASSES)
    assert jnp.allclose(logits, ref, atol=1e-4, rtol=1e-4), "mismatch vs reference"

    print("KERNEL_OK")
</pallas_src>

<mosaic_0001>
module attributes {stable_mosaic.version = 11 : i64} {
  func.func @fused_forward_kernel(%arg0: i32, %arg1: memref<8x512xf32, #tpu.memory_space<vmem>>, %arg2: memref<24x128xf32, #tpu.memory_space<vmem>>, %arg3: memref<2x10xf32, #tpu.memory_space<vmem>>, %arg4: memref<80x512xf32, #tpu.memory_space<vmem>>) attributes {dimension_semantics = [#tpu.dimension_semantics<arbitrary>], iteration_bounds = array<i64: 1>, scalar_prefetch = 0 : i64, scratch_operands = 1 : i64, tpu.core_type = #tpu.core_type<tc>, window_params = [{pipeline_mode = #tpu.pipeline_mode<synchronous>, transform_indices = @transform_0, window_bounds = array<i64: 8, 512>}, {pipeline_mode = #tpu.pipeline_mode<synchronous>, transform_indices = @transform_1, window_bounds = array<i64: 24, 128>}, {pipeline_mode = #tpu.pipeline_mode<synchronous>, transform_indices = @transform_2, window_bounds = array<i64: 2, 10>}]} {
    %c0 = arith.constant 0 : index
    %c0_0 = arith.constant 0 : index
    %0 = vector.load %arg1[%c0, %c0_0] : memref<8x512xf32, #tpu.memory_space<vmem>>, vector<8x512xf32>
    %1 = tpu.iota {dimensions = array<i32: 1>} : vector<8x512xi32>
    %c255_i32 = arith.constant 255 : i32
    %2 = vector.broadcast %c255_i32 : i32 to vector<8x512xi32>
    %3 = arith.andi %1, %2 : vector<8x512xi32>
    %c4_i32 = arith.constant 4 : i32
    %4 = vector.broadcast %c4_i32 : i32 to vector<8x512xi32>
    %5 = arith.shrsi %3, %4 : vector<8x512xi32>
    %c15_i32 = arith.constant 15 : i32
    %6 = vector.broadcast %c15_i32 : i32 to vector<8x512xi32>
    %7 = arith.andi %3, %6 : vector<8x512xi32>
    %c17_i32 = arith.constant 17 : i32
    %8 = tpu.dynamic_rotate %0 by %c17_i32 dim 1 : vector<8x512xf32>, i32 -> vector<8x512xf32>
    %c1_i32 = arith.constant 1 : i32
    %9 = vector.broadcast %c1_i32 : i32 to vector<8x512xi32>
    %10 = arith.cmpi sge, %5, %9 : vector<8x512xi32>
    %c1_i32_1 = arith.constant 1 : i32
    %11 = vector.broadcast %c1_i32_1 : i32 to vector<8x512xi32>
    %12 = arith.cmpi sge, %7, %11 : vector<8x512xi32>
    %13 = arith.andi %10, %12 : vector<8x512xi1>
    %cst = arith.constant 0.000000e+00 : f32
    %14 = vector.broadcast %cst : f32 to vector<8x512xf32>
    %15 = arith.select %13, %8, %14 : vector<8x512xi1>, vector<8x512xf32>
    %c0_2 = arith.constant 0 : index
    %c0_3 = arith.constant 0 : index
    %16 = vector.load %arg4[%c0_2, %c0_3] : memref<80x512xf32, #tpu.memory_space<vmem>>, vector<8x512xf32>
    tpu.vector_store %arg4[%c0_2, %c0_3], %15 {strides = array<i32>} : memref<80x512xf32, #tpu.memory_space<vmem>>, vector<8x512xf32>,
    %c16_i32 = arith.constant 16 : i32
    %17 = tpu.dynamic_rotate %0 by %c16_i32 dim 1 : vector<8x512xf32>, i32 -> vector<8x512xf32>
    %c1_i32_4 = arith.constant 1 : i32
    %18 = vector.broadcast %c1_i32_4 : i32 to vector<8x512xi32>
    %19 = arith.cmpi sge, %5, %18 : vector<8x512xi32>
    %cst_5 = arith.constant 0.000000e+00 : f32
    %20 = vector.broadcast %cst_5 : f32 to vector<8x512xf32>
    %21 = arith.select %19, %17, %20 : vector<8x512xi1>, vector<8x512xf32>
    %c8 = arith.constant 8 : index
    %c0_6 = arith.constant 0 : index
    %22 = vector.load %arg4[%c8, %c0_6] : memref<80x512xf32, #tpu.memory_space<vmem>>, vector<8x512xf32>
    tpu.vector_store %arg4[%c8, %c0_6], %21 {strides = array<i32>} : memref<80x512xf32, #tpu.memory_space<vmem>>, vector<8x512xf32>,
    %c15_i32_7 = arith.constant 15 : i32
    %23 = tpu.dynamic_rotate %0 by %c15_i32_7 dim 1 : vector<8x512xf32>, i32 -> vector<8x512xf32>
    %c1_i32_8 = arith.constant 1 : i32
    %24 = vector.broadcast %c1_i32_8 : i32 to vector<8x512xi32>
    %25 = arith.cmpi sge, %5, %24 : vector<8x512xi32>
    %c15_i32_9 = arith.constant 15 : i32
    %26 = vector.broadcast %c15_i32_9 : i32 to vector<8x512xi32>
    %27 = arith.cmpi slt, %7, %26 : vector<8x512xi32>
    %28 = arith.andi %25, %27 : vector<8x512xi1>
    %cst_10 = arith.constant 0.000000e+00 : f32
    %29 = vector.broadcast %cst_10 : f32 to vector<8x512xf32>
    %30 = arith.select %28, %23, %29 : vector<8x512xi1>, vector<8x512xf32>
    %c16 = arith.constant 16 : index
    %c0_11 = arith.constant 0 : index
    %31 = vector.load %arg4[%c16, %c0_11] : memref<80x512xf32, #tpu.memory_space<vmem>>, vector<8x512xf32>
    tpu.vector_store %arg4[%c16, %c0_11], %30 {strides = array<i32>} : memref<80x512xf32, #tpu.memory_space<vmem>>, vector<8x512xf32>,
    %c1_i32_12 = arith.constant 1 : i32
    %32 = tpu.dynamic_rotate %0 by %c1_i32_12 dim 1 : vector<8x512xf32>, i32 -> vector<8x512xf32>
    %c1_i32_13 = arith.constant 1 : i32
    %33 = vector.broadcast %c1_i32_13 : i32 to vector<8x512xi32>
    %34 = arith.cmpi sge, %7, %33 : vector<8x512xi32>
    %cst_14 = arith.constant 0.000000e+00 : f32
    %35 = vector.broadcast %cst_14 : f32 to vector<8x512xf32>
    %36 = arith.select %34, %32, %35 : vector<8x512xi1>, vector<8x512xf32>
    %c24 = arith.constant 24 : index
    %c0_15 = arith.constant 0 : index
    %37 = vector.load %arg4[%c24, %c0_15] : memref<80x512xf32, #tpu.memory_space<vmem>>, vector<8x512xf32>
    tpu.vector_store %arg4[%c24, %c0_15], %36 {strides = array<i32>} : memref<80x512xf32, #tpu.memory_space<vmem>>, vector<8x512xf32>,
    %c32 = arith.constant 32 : index
    %c0_16 = arith.constant 0 : index
    %38 = vector.load %arg4[%c32, %c0_16] : memref<80x512xf32, #tpu.memory_space<vmem>>, vector<8x512xf32>
    tpu.vector_store %arg4[%c32, %c0_16], %0 {strides = array<i32>} : memref<80x512xf32, #tpu.memory_space<vmem>>, vector<8x512xf32>,
    %c511_i32 = arith.constant 511 : i32
    %39 = tpu.dynamic_rotate %0 by %c511_i32 dim 1 : vector<8x512xf32>, i32 -> vector<8x512xf32>
    %c15_i32_17 = arith.constant 15 : i32
    %40 = vector.broadcast %c15_i32_17 : i32 to vector<8x512xi32>
    %41 = arith.cmpi slt, %7, %40 : vector<8x512xi32>
    %cst_18 = arith.constant 0.000000e+00 : f32
    %42 = vector.broadcast %cst_18 : f32 to vector<8x512xf32>
    %43 = arith.select %41, %39, %42 : vector<8x512xi1>, vector<8x512xf32>
    %c40 = arith.constant 40 : index
    %c0_19 = arith.constant 0 : index
    %44 = vector.load %arg4[%c40, %c0_19] : memref<80x512xf32, #tpu.memory_space<vmem>>, vector<8x512xf32>
    tpu.vector_store %arg4[%c40, %c0_19], %43 {strides = array<i32>} : memref<80x512xf32, #tpu.memory_space<vmem>>, vector<8x512xf32>,
    %c497_i32 = arith.constant 497 : i32
    %45 = tpu.dynamic_rotate %0 by %c497_i32 dim 1 : vector<8x512xf32>, i32 -> vector<8x512xf32>
    %c15_i32_20 = arith.constant 15 : i32
    %46 = vector.broadcast %c15_i32_20 : i32 to vector<8x512xi32>
    %47 = arith.cmpi slt, %5, %46 : vector<8x512xi32>
    %c1_i32_21 = arith.constant 1 : i32
    %48 = vector.broadcast %c1_i32_21 : i32 to vector<8x512xi32>
    %49 = arith.cmpi sge, %7, %48 : vector<8x512xi32>
    %50 = arith.andi %47, %49 : vector<8x512xi1>
    %cst_22 = arith.constant 0.000000e+00 : f32
    %51 = vector.broadcast %cst_22 : f32 to vector<8x512xf32>
    %52 = arith.select %50, %45, %51 : vector<8x512xi1>, vector<8x512xf32>
    %c48 = arith.constant 48 : index
    %c0_23 = arith.constant 0 : index
    %53 = vector.load %arg4[%c48, %c0_23] : memref<80x512xf32, #tpu.memory_space<vmem>>, vector<8x512xf32>
    tpu.vector_store %arg4[%c48, %c0_23], %52 {strides = array<i32>} : memref<80x512xf32, #tpu.memory_space<vmem>>, vector<8x512xf32>,
    %c496_i32 = arith.constant 496 : i32
    %54 = tpu.dynamic_rotate %0 by %c496_i32 dim 1 : vector<8x512xf32>, i32 -> vector<8x512xf32>
    %c15_i32_24 = arith.constant 15 : i32
    %55 = vector.broadcast %c15_i32_24 : i32 to vector<8x512xi32>
    %56 = arith.cmpi slt, %5, %55 : vector<8x512xi32>
    %cst_25 = arith.constant 0.000000e+00 : f32
    %57 = vector.broadcast %cst_25 : f32 to vector<8x512xf32>
    %58 = arith.select %56, %54, %57 : vector<8x512xi1>, vector<8x512xf32>
    %c56 = arith.constant 56 : index
    %c0_26 = arith.constant 0 : index
    %59 = vector.load %arg4[%c56, %c0_26] : memref<80x512xf32, #tpu.memory_space<vmem>>, vector<8x512xf32>
    tpu.vector_store %arg4[%c56, %c0_26], %58 {strides = array<i32>} : memref<80x512xf32, #tpu.memory_space<vmem>>, vector<8x512xf32>,
    %c495_i32 = arith.constant 495 : i32
    %60 = tpu.dynamic_rotate %0 by %c495_i32 dim 1 : vector<8x512xf32>, i32 -> vector<8x512xf32>
    %c15_i32_27 = arith.constant 15 : i32
    %61 = vector.broadcast %c15_i32_27 : i32 to vector<8x512xi32>
    %62 = arith.cmpi slt, %5, %61 : vector<8x512xi32>
    %c15_i32_28 = arith.constant 15 : i32
    %63 = vector.broadcast %c15_i32_28 : i32 to vector<8x512xi32>
    %64 = arith.cmpi slt, %7, %63 : vector<8x512xi32>
    %65 = arith.andi %62, %64 : vector<8x512xi1>
    %cst_29 = arith.constant 0.000000e+00 : f32
    %66 = vector.broadcast %cst_29 : f32 to vector<8x512xf32>
    %67 = arith.select %65, %60, %66 : vector<8x512xi1>, vector<8x512xf32>
    %c64 = arith.constant 64 : index
    %c0_30 = arith.constant 0 : index
    %68 = vector.load %arg4[%c64, %c0_30] : memref<80x512xf32, #tpu.memory_space<vmem>>, vector<8x512xf32>
    tpu.vector_store %arg4[%c64, %c0_30], %67 {strides = array<i32>} : memref<80x512xf32, #tpu.memory_space<vmem>>, vector<8x512xf32>,
    %69 = tpu.iota {dimensions = array<i32: 0>} : vector<8x512xi32>
    %c0_i32 = arith.constant 0 : i32
    %70 = vector.broadcast %c0_i32 : i32 to vector<8x512xi32>
    %71 = arith.cmpi eq, %69, %70 : vector<8x512xi32>
    %72 = arith.extui %71 : vector<8x512xi1> to vector<8x512xi32>
    %73 = arith.sitofp %72 : vector<8x512xi32> to vector<8x512xf32>
    %c72 = arith.constant 72 : index
    %c0_31 = arith.constant 0 : index
    %74 = vector.load %arg4[%c72, %c0_31] : memref<80x512xf32, #tpu.memory_space<vmem>>, vector<8x512xf32>
    tpu.vector_store %arg4[%c72, %c0_31], %73 {strides = array<i32>} : memref<80x512xf32, #tpu.memory_space<vmem>>, vector<8x512xf32>,
    %c0_32 = arith.constant 0 : index
    %c0_33 = arith.constant 0 : index
    %75 = vector.load %arg2[%c0_32, %c0_33] : memref<24x128xf32, #tpu.memory_space<vmem>>, vector<8x80xf32>
    %c0_34 = arith.constant 0 : index
    %c0_35 = arith.constant 0 : index
    %76 = vector.load %arg4[%c0_34, %c0_35] : memref<80x512xf32, #tpu.memory_space<vmem>>, vector<80x512xf32>
    %cst_36 = arith.constant dense<0.000000e+00> : vector<8x512xf32>
    %77 = tpu.matmul %75, %76, %cst_36 {dimension_numbers = #tpu.dot_dimension_numbers<[1], [0], [0], [1], [0, 0, 1, 1], [], []>} : vector<8x80xf32>, vector<80x512xf32>, vector<8x512xf32> -> vector<8x512xf32>
    %cst_37 = arith.constant 0.000000e+00 : f32
    %78 = vector.broadcast %cst_37 : f32 to vector<8x512xf32>
    %79 = arith.maximumf %77, %78 : vector<8x512xf32>
    %80 = tpu.iota {dimensions = array<i32: 1>} : vector<2x512xi32>
    %c8_i32 = arith.constant 8 : i32
    %81 = vector.broadcast %c8_i32 : i32 to vector<2x512xi32>
    %82 = arith.shrsi %80, %81 : vector<2x512xi32>
    %83 = tpu.iota {dimensions = array<i32: 0>} : vector<2x512xi32>
    %84 = arith.cmpi eq, %82, %83 : vector<2x512xi32>
    %85 = arith.extui %84 : vector<2x512xi1> to vector<2x512xi32>
    %86 = arith.sitofp %85 : vector<2x512xi32> to vector<2x512xf32>
    %cst_38 = arith.constant dense<0.000000e+00> : vector<2x8xf32>
    %87 = tpu.matmul %86, %79, %cst_38 {dimension_numbers = #tpu.dot_dimension_numbers<[1], [1], [0], [0], [0, 0, 1, 0], [], []>} : vector<2x512xf32>, vector<8x512xf32>, vector<2x8xf32> -> vector<2x8xf32>
    %c8_39 = arith.constant 8 : index
    %c0_40 = arith.constant 0 : index
    %88 = vector.load %arg2[%c8_39, %c0_40] : memref<24x128xf32, #tpu.memory_space<vmem>>, vector<8x10xf32>
    %c16_41 = arith.constant 16 : index
    %c0_42 = arith.constant 0 : index
    %89 = vector.load %arg2[%c16_41, %c0_42] : memref<24x128xf32, #tpu.memory_space<vmem>>, vector<1x10xf32>
    %cst_43 = arith.constant dense<0.000000e+00> : vector<2x10xf32>
    %90 = tpu.matmul %87, %88, %cst_43 {dimension_numbers = #tpu.dot_dimension_numbers<[1], [0], [0], [1], [0, 0, 1, 1], [], []>} : vector<2x8xf32>, vector<8x10xf32>, vector<2x10xf32> -> vector<2x10xf32>
    %91 = vector.broadcast %89 : vector<1x10xf32> to vector<2x10xf32>
    %92 = arith.addf %90, %91 : vector<2x10xf32>
    %c0_44 = arith.constant 0 : index
    %c0_45 = arith.constant 0 : index
    %93 = vector.load %arg3[%c0_44, %c0_45] : memref<2x10xf32, #tpu.memory_space<vmem>>, vector<2x10xf32>
    tpu.vector_store %arg3[%c0_44, %c0_45], %92 {strides = array<i32>} : memref<2x10xf32, #tpu.memory_space<vmem>>, vector<2x10xf32>,
    return
  }
  func.func @transform_0(%arg0: i32) -> (i32, i32) {
    %c0_i32 = arith.constant 0 : i32
    %c0_i32_0 = arith.constant 0 : i32
    %c0_i32_1 = arith.constant 0 : i32
    return %c0_i32, %c0_i32_0 : i32, i32
  }
  func.func @transform_1(%arg0: i32) -> (i32, i32) {
    %c0_i32 = arith.constant 0 : i32
    %c0_i32_0 = arith.constant 0 : i32
    %c0_i32_1 = arith.constant 0 : i32
    return %c0_i32, %c0_i32_0 : i32, i32
  }
  func.func @transform_2(%arg0: i32) -> (i32, i32) {
    %c0_i32 = arith.constant 0 : i32
    %c0_i32_0 = arith.constant 0 : i32
    %c0_i32_1 = arith.constant 0 : i32
    return %c0_i32, %c0_i32_0 : i32, i32
  }
}

</mosaic_0001>

<llo_original>
// kernel: image_classifier_forward.1
$region0: #{image_classifier_forward.1}
  #allocation0 [shape = 'u32[]', space=smem, size = 0x4, offset = 0x4, fixed_abs, tag = 'smem constant byte address 0x4 - core index']
  #allocation1 [shape = 'u32[72,128]{1,0:T(1,128)}', space=vmem, size = 0x9000, scoped, tag = 'internal scratch']
  #allocation2 [shape = 'f32[80,512]{1,0:T(8,128)}', space=vmem, size = 0x28000, scoped, tag = 'scratch operand']
  %s0 = inlined_call_operand.vmem [shape: f32[8,512], index: 0, kind: input, shape index: {}]
  %s1 = inlined_call_operand.vmem [shape: f32[24,128], index: 1, kind: input, shape index: {}]
  %s2 = inlined_call_operand.hbm [shape: f32[2,10], index: 2, kind: output, shape index: {}]
  %s3 = sld [smem:[#allocation0]]
  $region18: #{image_classifier_forward.1} parent=0
    _
  %s5 = ssub.s32 1, %s3
  %s6 = scalar_select 0, %s5, %s3
  $region1: #{image_classifier_forward.1} parent=0
    #allocation3 [shape = 'u8[1024]{0}', space=vmem, size = 0x400, scoped, tag = 'output window, operand 0, single buffered']
    #allocation4 [shape = 's32[1]{0}', space=sflag, size = 0x4, scoped, tag = 'scoped memory for image_classifier_forward.1']
    %7 = vsyncpa [#allocation4], 0
    // Predicated region
    $region2: #{image_classifier_forward.1} parent=1 // pred_check
      _
    $region3: #{image_classifier_forward.1} parent=1 // pred_check_branch
      %9 = sbr.rel (0) target = $region5
    $region4: #{image_classifier_forward.1} parent=1 // pred_region
      _
    $region5: #{image_classifier_forward.1} parent=1 // pred_fallthru
      _
    // Predicated region
    $region6: #{image_classifier_forward.1} parent=1 // pred_check
      _
    $region7: #{image_classifier_forward.1} parent=1 // pred_check_branch
      %11 = sbr.rel (0) target = $region9
    $region8: #{image_classifier_forward.1} parent=1 // pred_region
      _
    $region9: #{image_classifier_forward.1} parent=1 // pred_fallthru
      _
    %v12 = vld [vmem:[%s0] sm:$0xff]
    %v13 = vld [vmem:[%s0 + $0x8] sm:$0xff]
    %v14 = vld [vmem:[%s0 + $0x10] sm:$0xff]
    %v15 = vld [vmem:[%s0 + $0x18] sm:$0xff]
    %v16 = vlaneseq
    %v17 = vand.u32 %v16, 127
    %v18 = vadd.s32 %v17, 128
    %v19 = vadd.s32 %v17, 256
    %v20 = vadd.s32 %v17, 384
    %v21 = vand.u32 %v17, 255
    %v22 = vand.u32 %v18, 255
    %v23 = vand.u32 %v19, 255
    %v24 = vand.u32 %v20, 255
    %v25 = vshra.s32 %v21, 4
    %v26 = vshra.s32 %v22, 4
    %v27 = vshra.s32 %v23, 4
    %v28 = vshra.s32 %v24, 4
    %v29 = vand.u32 %v21, 15
    %v30 = vand.u32 %v22, 15
    %v31 = vand.u32 %v23, 15
    %v32 = vand.u32 %v24, 15
    %33 = vrot.lane.b32.xlu0 %v12, 17
    %v34 = vpop.permute.xlu0 %33
    %35 = vrot.lane.b32.xlu0 %v13, 17
    %v36 = vpop.permute.xlu0 %35
    %37 = vrot.lane.b32.xlu0 %v14, 17
    %v38 = vpop.permute.xlu0 %37
    %39 = vrot.lane.b32.xlu0 %v15, 17
    %v40 = vpop.permute.xlu0 %39
    %vm41 = vcmp.lt.s32.totalorder %v17, 17
    %v42 = vsel %vm41, %v38, %v40
    %v43 = vsel %vm41, %v36, %v38
    %v44 = vsel %vm41, %v34, %v36
    %v45 = vsel %vm41, %v40, %v34
    %vm46 = vcmp.ge.s32.totalorder %v25, 1
    %vm47 = vcmp.ge.s32.totalorder %v26, 1
    %vm48 = vcmp.ge.s32.totalorder %v27, 1
    %vm49 = vcmp.ge.s32.totalorder %v28, 1
    %vm50 = vcmp.ge.s32.totalorder %v29, 1
    %vm51 = vcmp.ge.s32.totalorder %v30, 1
    %vm52 = vcmp.ge.s32.totalorder %v31, 1
    %vm53 = vcmp.ge.s32.totalorder %v32, 1
    %vm54 = vmand %vm46, %vm50
    %vm55 = vmand %vm47, %vm51
    %vm56 = vmand %vm48, %vm52
    %vm57 = vmand %vm49, %vm53
    %v58 = vsel %vm54, %v45, 0.0
    %v59 = vsel %vm55, %v44, 0.0
    %v60 = vsel %vm56, %v43, 0.0
    %v61 = vsel %vm57, %v42, 0.0
    %62 = vst [vmem:[#allocation2] sm:$0xff] %v58
    %63 = vst [vmem:[#allocation2 + $0x8] sm:$0xff] %v59
    %64 = vst [vmem:[#allocation2 + $0x10] sm:$0xff] %v60
    %65 = vst [vmem:[#allocation2 + $0x18] sm:$0xff] %v61
    %66 = vrot.lane.b32.xlu0 %v12, 16
    %v67 = vpop.permute.xlu0 %66
    %68 = vrot.lane.b32.xlu0 %v13, 16
    %v69 = vpop.permute.xlu0 %68
    %70 = vrot.lane.b32.xlu0 %v14, 16
    %v71 = vpop.permute.xlu0 %70
    %72 = vrot.lane.b32.xlu0 %v15, 16
    %v73 = vpop.permute.xlu0 %72
    %vm74 = vcmp.lt.s32.totalorder %v17, 16
    %v75 = vsel %vm74, %v71, %v73
    %v76 = vsel %vm74, %v69, %v71
    %v77 = vsel %vm74, %v67, %v69
    %v78 = vsel %vm74, %v73, %v67
    %v79 = vsel %vm46, %v78, 0.0
    %v80 = vsel %vm47, %v77, 0.0
    %v81 = vsel %vm48, %v76, 0.0
    %v82 = vsel %vm49, %v75, 0.0
    %83 = vst [vmem:[#allocation2 + $0x20] sm:$0xff] %v79
    %84 = vst [vmem:[#allocation2 + $0x28] sm:$0xff] %v80
    %85 = vst [vmem:[#allocation2 + $0x30] sm:$0xff] %v81
    %86 = vst [vmem:[#allocation2 + $0x38] sm:$0xff] %v82
    %87 = vrot.lane.b32.xlu0 %v12, 15
    %v88 = vpop.permute.xlu0 %87
    %89 = vrot.lane.b32.xlu0 %v13, 15
    %v90 = vpop.permute.xlu0 %89
    %91 = vrot.lane.b32.xlu0 %v14, 15
    %v92 = vpop.permute.xlu0 %91
    %93 = vrot.lane.b32.xlu0 %v15, 15
    %v94 = vpop.permute.xlu0 %93
    %vm95 = vcmp.lt.s32.totalorder %v17, 15
    %v96 = vsel %vm95, %v92, %v94
    %v97 = vsel %vm95, %v90, %v92
    %v98 = vsel %vm95, %v88, %v90
    %v99 = vsel %vm95, %v94, %v88
    %vm100 = vcmp.lt.s32.totalorder %v29, 15
    %vm101 = vcmp.lt.s32.totalorder %v30, 15
    %vm102 = vcmp.lt.s32.totalorder %v31, 15
    %vm103 = vcmp.lt.s32.totalorder %v32, 15
    %vm104 = vmand %vm46, %vm100
    %vm105 = vmand %vm47, %vm101
    %vm106 = vmand %vm48, %vm102
    %vm107 = vmand %vm49, %vm103
    %v108 = vsel %vm104, %v99, 0.0
    %v109 = vsel %vm105, %v98, 0.0
    %v110 = vsel %vm106, %v97, 0.0
    %v111 = vsel %vm107, %v96, 0.0
    %112 = vst [vmem:[#allocation2 + $0x40] sm:$0xff] %v108
    %113 = vst [vmem:[#allocation2 + $0x48] sm:$0xff] %v109
    %114 = vst [vmem:[#allocation2 + $0x50] sm:$0xff] %v110
    %115 = vst [vmem:[#allocation2 + $0x58] sm:$0xff] %v111
    %116 = vrot.lane.b32.xlu0 %v12, 1
    %v117 = vpop.permute.xlu0 %116
    %118 = vrot.lane.b32.xlu0 %v13, 1
    %v119 = vpop.permute.xlu0 %118
    %120 = vrot.lane.b32.xlu0 %v14, 1
    %v121 = vpop.permute.xlu0 %120
    %122 = vrot.lane.b32.xlu0 %v15, 1
    %v123 = vpop.permute.xlu0 %122
    %vm124 = vcmp.lt.s32.totalorder %v17, 1
    %v125 = vsel %vm124, %v121, %v123
    %v126 = vsel %vm124, %v119, %v121
    %v127 = vsel %vm124, %v117, %v119
    %v128 = vsel %vm124, %v123, %v117
    %v129 = vsel %vm50, %v128, 0.0
    %v130 = vsel %vm51, %v127, 0.0
    %v131 = vsel %vm52, %v126, 0.0
    %v132 = vsel %vm53, %v125, 0.0
    %133 = vst [vmem:[#allocation2 + $0x60] sm:$0xff] %v129
    %134 = vst [vmem:[#allocation2 + $0x68] sm:$0xff] %v130
    %135 = vst [vmem:[#allocation2 + $0x70] sm:$0xff] %v131
    %136 = vst [vmem:[#allocation2 + $0x78] sm:$0xff] %v132
    %137 = vst [vmem:[#allocation2 + $0x80] sm:$0xff] %v12
    %138 = vst [vmem:[#allocation2 + $0x88] sm:$0xff] %v13
    %139 = vst [vmem:[#allocation2 + $0x90] sm:$0xff] %v14
    %140 = vst [vmem:[#allocation2 + $0x98] sm:$0xff] %v15
    %141 = vrot.lane.b32.xlu0 %v12, 127
    %v142 = vpop.permute.xlu0 %141
    %143 = vrot.lane.b32.xlu0 %v13, 127
    %v144 = vpop.permute.xlu0 %143
    %145 = vrot.lane.b32.xlu0 %v14, 127
    %v146 = vpop.permute.xlu0 %145
    %147 = vrot.lane.b32.xlu0 %v15, 127
    %v148 = vpop.permute.xlu0 %147
    %vm149 = vcmp.lt.s32.totalorder %v17, 127
    %v150 = vsel %vm149, %v146, %v148
    %v151 = vsel %vm149, %v144, %v146
    %v152 = vsel %vm149, %v142, %v144
    %v153 = vsel %vm149, %v148, %v142
    %v154 = vsel %vm100, %v152, 0.0
    %v155 = vsel %vm101, %v151, 0.0
    %v156 = vsel %vm102, %v150, 0.0
    %v157 = vsel %vm103, %v153, 0.0
    %158 = vst [vmem:[#allocation2 + $0xa0] sm:$0xff] %v154
    %159 = vst [vmem:[#allocation2 + $0xa8] sm:$0xff] %v155
    %160 = vst [vmem:[#allocation2 + $0xb0] sm:$0xff] %v156
    %161 = vst [vmem:[#allocation2 + $0xb8] sm:$0xff] %v157
    %162 = vrot.lane.b32.xlu0 %v12, 113
    %v163 = vpop.permute.xlu0 %162
    %164 = vrot.lane.b32.xlu0 %v13, 113
    %v165 = vpop.permute.xlu0 %164
    %166 = vrot.lane.b32.xlu0 %v14, 113
    %v167 = vpop.permute.xlu0 %166
    %168 = vrot.lane.b32.xlu0 %v15, 113
    %v169 = vpop.permute.xlu0 %168
    %vm170 = vcmp.lt.s32.totalorder %v17, 113
    %v171 = vsel %vm170, %v167, %v169
    %v172 = vsel %vm170, %v165, %v167
    %v173 = vsel %vm170, %v163, %v165
    %v174 = vsel %vm170, %v169, %v163
    %vm175 = vcmp.lt.s32.totalorder %v25, 15
    %vm176 = vcmp.lt.s32.totalorder %v26, 15
    %vm177 = vcmp.lt.s32.totalorder %v27, 15
    %vm178 = vcmp.lt.s32.totalorder %v28, 15
    %vm179 = vmand %vm175, %vm50
    %vm180 = vmand %vm176, %vm51
    %vm181 = vmand %vm177, %vm52
    %vm182 = vmand %vm178, %vm53
    %v183 = vsel %vm179, %v173, 0.0
    %v184 = vsel %vm180, %v172, 0.0
    %v185 = vsel %vm181, %v171, 0.0
    %v186 = vsel %vm182, %v174, 0.0
    %187 = vst [vmem:[#allocation2 + $0xc0] sm:$0xff] %v183
    %188 = vst [vmem:[#allocation2 + $0xc8] sm:$0xff] %v184
    %189 = vst [vmem:[#allocation2 + $0xd0] sm:$0xff] %v185
    %190 = vst [vmem:[#allocation2 + $0xd8] sm:$0xff] %v186
    %191 = vrot.lane.b32.xlu0 %v12, 112
    %v192 = vpop.permute.xlu0 %191
    %193 = vrot.lane.b32.xlu0 %v13, 112
    %v194 = vpop.permute.xlu0 %193
    %195 = vrot.lane.b32.xlu0 %v14, 112
    %v196 = vpop.permute.xlu0 %195
    %197 = vrot.lane.b32.xlu0 %v15, 112
    %v198 = vpop.permute.xlu0 %197
    %vm199 = vcmp.lt.s32.totalorder %v17, 112
    %v200 = vsel %vm199, %v196, %v198
    %v201 = vsel %vm199, %v194, %v196
    %v202 = vsel %vm199, %v192, %v194
    %v203 = vsel %vm199, %v198, %v192
    %v204 = vsel %vm175, %v202, 0.0
    %v205 = vsel %vm176, %v201, 0.0
    %v206 = vsel %vm177, %v200, 0.0
    %v207 = vsel %vm178, %v203, 0.0
    %208 = vst [vmem:[#allocation2 + $0xe0] sm:$0xff] %v204
    %209 = vst [vmem:[#allocation2 + $0xe8] sm:$0xff] %v205
    %210 = vst [vmem:[#allocation2 + $0xf0] sm:$0xff] %v206
    %211 = vst [vmem:[#allocation2 + $0xf8] sm:$0xff] %v207
    %212 = vrot.lane.b32.xlu0 %v12, 111
    %v213 = vpop.permute.xlu0 %212
    %214 = vrot.lane.b32.xlu0 %v13, 111
    %v215 = vpop.permute.xlu0 %214
    %216 = vrot.lane.b32.xlu0 %v14, 111
    %v217 = vpop.permute.xlu0 %216
    %218 = vrot.lane.b32.xlu0 %v15, 111
    %v219 = vpop.permute.xlu0 %218
    %vm220 = vcmp.lt.s32.totalorder %v17, 111
    %v221 = vsel %vm220, %v217, %v219
    %v222 = vsel %vm220, %v215, %v217
    %v223 = vsel %vm220, %v213, %v215
    %v224 = vsel %vm220, %v219, %v213
    %vm225 = vmand %vm175, %vm100
    %vm226 = vmand %vm176, %vm101
    %vm227 = vmand %vm177, %vm102
    %vm228 = vmand %vm178, %vm103
    %v229 = vsel %vm225, %v223, 0.0
    %v230 = vsel %vm226, %v222, 0.0
    %v231 = vsel %vm227, %v221, 0.0
    %v232 = vsel %vm228, %v224, 0.0
    %233 = vst [vmem:[#allocation2 + $0x100] sm:$0xff] %v229
    %234 = vst [vmem:[#allocation2 + $0x108] sm:$0xff] %v230
    %235 = vst [vmem:[#allocation2 + $0x110] sm:$0xff] %v231
    %236 = vst [vmem:[#allocation2 + $0x118] sm:$0xff] %v232
    %v237 = vlaneseq
    %v238 = vshrl.u32 %v237, 7
    %vm239 = vcmp.eq.s32.totalorder %v238, 0
    %v240 = vsel %vm239, 1, 0
    %v241 = vcvt.s32.f32 %v240
    %242 = vst [vmem:[#allocation2 + $0x120] sm:$0xff] %v241
    %243 = vst [vmem:[#allocation2 + $0x128] sm:$0xff] %v241
    %244 = vst [vmem:[#allocation2 + $0x130] sm:$0xff] %v241
    %245 = vst [vmem:[#allocation2 + $0x138] sm:$0xff] %v241
    %v246 = vld [vmem:[%s1] sm:$0xff]
    %v247 = vld [vmem:[#allocation2] sm:$0xff]
    %v248 = vld [vmem:[#allocation2 + $0x8] sm:$0xff]
    %v249 = vld [vmem:[#allocation2 + $0x10] sm:$0xff]
    %v250 = vld [vmem:[#allocation2 + $0x18] sm:$0xff]
    %v251 = vld [vmem:[#allocation2 + $0x20] sm:$0xff]
    %v252 = vld [vmem:[#allocation2 + $0x28] sm:$0xff]
    %v253 = vld [vmem:[#allocation2 + $0x30] sm:$0xff]
    %v254 = vld [vmem:[#allocation2 + $0x38] sm:$0xff]
    %v255 = vld [vmem:[#allocation2 + $0x40] sm:$0xff]
    %v256 = vld [vmem:[#allocation2 + $0x48] sm:$0xff]
    %v257 = vld [vmem:[#allocation2 + $0x50] sm:$0xff]
    %v258 = vld [vmem:[#allocation2 + $0x58] sm:$0xff]
    %v259 = vld [vmem:[#allocation2 + $0x60] sm:$0xff]
    %v260 = vld [vmem:[#allocation2 + $0x68] sm:$0xff]
    %v261 = vld [vmem:[#allocation2 + $0x70] sm:$0xff]
    %v262 = vld [vmem:[#allocation2 + $0x78] sm:$0xff]
    %v263 = vld [vmem:[#allocation2 + $0x80] sm:$0xff]
    %v264 = vld [vmem:[#allocation2 + $0x88] sm:$0xff]
    %v265 = vld [vmem:[#allocation2 + $0x90] sm:$0xff]
    %v266 = vld [vmem:[#allocation2 + $0x98] sm:$0xff]
    %v267 = vld [vmem:[#allocation2 + $0xa0] sm:$0xff]
    %v268 = vld [vmem:[#allocation2 + $0xa8] sm:$0xff]
    %v269 = vld [vmem:[#allocation2 + $0xb0] sm:$0xff]
    %v270 = vld [vmem:[#allocation2 + $0xb8] sm:$0xff]
    %v271 = vld [vmem:[#allocation2 + $0xc0] sm:$0xff]
    %v272 = vld [vmem:[#allocation2 + $0xc8] sm:$0xff]
    %v273 = vld [vmem:[#allocation2 + $0xd0] sm:$0xff]
    %v274 = vld [vmem:[#allocation2 + $0xd8] sm:$0xff]
    %v275 = vld [vmem:[#allocation2 + $0xe0] sm:$0xff]
    %v276 = vld [vmem:[#allocation2 + $0xe8] sm:$0xff]
    %v277 = vld [vmem:[#allocation2 + $0xf0] sm:$0xff]
    %v278 = vld [vmem:[#allocation2 + $0xf8] sm:$0xff]
    %v279 = vld [vmem:[#allocation2 + $0x100] sm:$0xff]
    %v280 = vld [vmem:[#allocation2 + $0x108] sm:$0xff]
    %v281 = vld [vmem:[#allocation2 + $0x110] sm:$0xff]
    %v282 = vld [vmem:[#allocation2 + $0x118] sm:$0xff]
    %v283 = vld [vmem:[#allocation2 + $0x120] sm:$0xff]
    %v284 = vld [vmem:[#allocation2 + $0x128] sm:$0xff]
    %v285 = vld [vmem:[#allocation2 + $0x130] sm:$0xff]
    %v286 = vld [vmem:[#allocation2 + $0x138] sm:$0xff]
    %vm287 = vcmask 654336
    %v289 = vsel %vm287, %v246, 0
    %291 = vmatpush.msra.mxu0 0.0
    %292 = vmatpush.msra.mxu0 0.0
    %293 = vmatpush.msra.mxu0 0.0
    %294 = vmatpush.msra.mxu0 0.0
    %295 = vmatpush.msra.mxu0 0.0
    %296 = vmatpush.msra.mxu0 0.0
    %297 = vmatpush.msra.mxu0 %v283
    %298 = vmatpush.msra.mxu0 %v279
    %299 = vmatpush.msra.mxu0 %v275
    %300 = vmatpush.msra.mxu0 %v271
    %301 = vmatpush.msra.mxu0 %v267
    %302 = vmatpush.msra.mxu0 %v263
    %303 = vmatpush.msra.mxu0 %v259
    %304 = vmatpush.msra.mxu0 %v255
    %305 = vmatpush.msra.mxu0 %v251
    %306 = vmatpush.msra.mxu0 %v247
    %307 = vmatmul.f32.gmra.mxu0 %v289
    %v308 = vpop.f32.mrf.mxu0
    %v309 = vadd.f32 0.0, %v308
    %310 = vdwg.mxu0
    %311 = vmatpush.msra.mxu0 0.0
    %312 = vmatpush.msra.mxu0 0.0
    %313 = vmatpush.msra.mxu0 0.0
    %314 = vmatpush.msra.mxu0 0.0
    %315 = vmatpush.msra.mxu0 0.0
    %316 = vmatpush.msra.mxu0 0.0
    %317 = vmatpush.msra.mxu0 %v284
    %318 = vmatpush.msra.mxu0 %v280
    %319 = vmatpush.msra.mxu0 %v276
    %320 = vmatpush.msra.mxu0 %v272
    %321 = vmatpush.msra.mxu0 %v268
    %322 = vmatpush.msra.mxu0 %v264
    %323 = vmatpush.msra.mxu0 %v260
    %324 = vmatpush.msra.mxu0 %v256
    %325 = vmatpush.msra.mxu0 %v252
    %326 = vmatpush.msra.mxu0 %v248
    %327 = vmatmul.f32.gmra.mxu0 %v289
    %v328 = vpop.f32.mrf.mxu0
    %v329 = vadd.f32 0.0, %v328
    %330 = vdwg.mxu0
    %331 = vmatpush.msra.mxu0 0.0
    %332 = vmatpush.msra.mxu0 0.0
    %333 = vmatpush.msra.mxu0 0.0
    %334 = vmatpush.msra.mxu0 0.0
    %335 = vmatpush.msra.mxu0 0.0
    %336 = vmatpush.msra.mxu0 0.0
    %337 = vmatpush.msra.mxu0 %v285
    %338 = vmatpush.msra.mxu0 %v281
    %339 = vmatpush.msra.mxu0 %v277
    %340 = vmatpush.msra.mxu0 %v273
    %341 = vmatpush.msra.mxu0 %v269
    %342 = vmatpush.msra.mxu0 %v265
    %343 = vmatpush.msra.mxu0 %v261
    %344 = vmatpush.msra.mxu0 %v257
    %345 = vmatpush.msra.mxu0 %v253
    %346 = vmatpush.msra.mxu0 %v249
    %347 = vmatmul.f32.gmra.mxu0 %v289
    %v348 = vpop.f32.mrf.mxu0
    %v349 = vadd.f32 0.0, %v348
    %350 = vdwg.mxu0
    %351 = vmatpush.msra.mxu0 0.0
    %352 = vmatpush.msra.mxu0 0.0
    %353 = vmatpush.msra.mxu0 0.0
    %354 = vmatpush.msra.mxu0 0.0
    %355 = vmatpush.msra.mxu0 0.0
    %356 = vmatpush.msra.mxu0 0.0
    %357 = vmatpush.msra.mxu0 %v286
    %358 = vmatpush.msra.mxu0 %v282
    %359 = vmatpush.msra.mxu0 %v278
    %360 = vmatpush.msra.mxu0 %v274
    %361 = vmatpush.msra.mxu0 %v270
    %362 = vmatpush.msra.mxu0 %v266
    %363 = vmatpush.msra.mxu0 %v262
    %364 = vmatpush.msra.mxu0 %v258
    %365 = vmatpush.msra.mxu0 %v254
    %366 = vmatpush.msra.mxu0 %v250
    %367 = vmatmul.f32.gmra.mxu0 %v289
    %v368 = vpop.f32.mrf.mxu0
    %v369 = vadd.f32 0.0, %v368
    %370 = vdwg.mxu0
    %v371 = vmax.f32 %v309, 0.0
    %v372 = vmax.f32 %v329, 0.0
    %v373 = vmax.f32 %v349, 0.0
    %v374 = vmax.f32 %v369, 0.0
    %v375 = vshra.s32 %v17, 8
    %v376 = vshra.s32 %v18, 8
    %v377 = vshra.s32 %v19, 8
    %v378 = vshra.s32 %v20, 8
    %vm379 = vcmp.eq.s32.totalorder %v375, %v238
    %vm380 = vcmp.eq.s32.totalorder %v376, %v238
    %vm381 = vcmp.eq.s32.totalorder %v377, %v238
    %vm382 = vcmp.eq.s32.totalorder %v378, %v238
    %v383 = vsel %vm379, 1, 0
    %v384 = vsel %vm380, 1, 0
    %v385 = vsel %vm381, 1, 0
    %v386 = vsel %vm382, 1, 0
    %v387 = vcvt.s32.f32 %v383
    %v388 = vcvt.s32.f32 %v384
    %v389 = vcvt.s32.f32 %v385
    %v390 = vcvt.s32.f32 %v386
    %391 = vmatpush.xpose.msra.mxu0 0.0
    %392 = vmatpush.xpose.msra.mxu0 0.0
    %393 = vmatpush.xpose.msra.mxu0 0.0
    %394 = vmatpush.xpose.msra.mxu0 0.0
    %395 = vmatpush.xpose.msra.mxu0 0.0
    %396 = vmatpush.xpose.msra.mxu0 0.0
    %397 = vmatpush.xpose.msra.mxu0 0.0
    %398 = vmatpush.xpose.msra.mxu0 0.0
    %399 = vmatpush.xpose.msra.mxu0 0.0
    %400 = vmatpush.xpose.msra.mxu0 0.0
    %401 = vmatpush.xpose.msra.mxu0 0.0
    %402 = vmatpush.xpose.msra.mxu0 0.0
    %403 = vmatpush.xpose.msra.mxu0 0.0
    %404 = vmatpush.xpose.msra.mxu0 0.0
    %405 = vmatpush.xpose.msra.mxu0 0.0
    %406 = vmatpush.xpose.msra.mxu0 %v371
    %407 = vmatmul.f32.gmra.mxu0 %v387
    %v408 = vpop.f32.mrf.mxu0
    %v409 = vadd.f32 0.0, %v408
    %410 = vdwg.mxu0
    %411 = vmatpush.xpose.msra.mxu0 0.0
    %412 = vmatpush.xpose.msra.mxu0 0.0
    %413 = vmatpush.xpose.msra.mxu0 0.0
    %414 = vmatpush.xpose.msra.mxu0 0.0
    %415 = vmatpush.xpose.msra.mxu0 0.0
    %416 = vmatpush.xpose.msra.mxu0 0.0
    %417 = vmatpush.xpose.msra.mxu0 0.0
    %418 = vmatpush.xpose.msra.mxu0 0.0
    %419 = vmatpush.xpose.msra.mxu0 0.0
    %420 = vmatpush.xpose.msra.mxu0 0.0
    %421 = vmatpush.xpose.msra.mxu0 0.0
    %422 = vmatpush.xpose.msra.mxu0 0.0
    %423 = vmatpush.xpose.msra.mxu0 0.0
    %424 = vmatpush.xpose.msra.mxu0 0.0
    %425 = vmatpush.xpose.msra.mxu0 0.0
    %426 = vmatpush.xpose.msra.mxu0 %v372
    %427 = vmatmul.f32.gmra.mxu0 %v388
    %v428 = vpop.f32.mrf.mxu0
    %v429 = vadd.f32 %v409, %v428
    %430 = vdwg.mxu0
    %431 = vmatpush.xpose.msra.mxu0 0.0
    %432 = vmatpush.xpose.msra.mxu0 0.0
    %433 = vmatpush.xpose.msra.mxu0 0.0
    %434 = vmatpush.xpose.msra.mxu0 0.0
    %435 = vmatpush.xpose.msra.mxu0 0.0
    %436 = vmatpush.xpose.msra.mxu0 0.0
    %437 = vmatpush.xpose.msra.mxu0 0.0
    %438 = vmatpush.xpose.msra.mxu0 0.0
    %439 = vmatpush.xpose.msra.mxu0 0.0
    %440 = vmatpush.xpose.msra.mxu0 0.0
    %441 = vmatpush.xpose.msra.mxu0 0.0
    %442 = vmatpush.xpose.msra.mxu0 0.0
    %443 = vmatpush.xpose.msra.mxu0 0.0
    %444 = vmatpush.xpose.msra.mxu0 0.0
    %445 = vmatpush.xpose.msra.mxu0 0.0
    %446 = vmatpush.xpose.msra.mxu0 %v373
    %447 = vmatmul.f32.gmra.mxu0 %v389
    %v448 = vpop.f32.mrf.mxu0
    %v449 = vadd.f32 %v429, %v448
    %450 = vdwg.mxu0
    %451 = vmatpush.xpose.msra.mxu0 0.0
    %452 = vmatpush.xpose.msra.mxu0 0.0
    %453 = vmatpush.xpose.msra.mxu0 0.0
    %454 = vmatpush.xpose.msra.mxu0 0.0
    %455 = vmatpush.xpose.msra.mxu0 0.0
    %456 = vmatpush.xpose.msra.mxu0 0.0
    %457 = vmatpush.xpose.msra.mxu0 0.0
    %458 = vmatpush.xpose.msra.mxu0 0.0
    %459 = vmatpush.xpose.msra.mxu0 0.0
    %460 = vmatpush.xpose.msra.mxu0 0.0
    %461 = vmatpush.xpose.msra.mxu0 0.0
    %462 = vmatpush.xpose.msra.mxu0 0.0
    %463 = vmatpush.xpose.msra.mxu0 0.0
    %464 = vmatpush.xpose.msra.mxu0 0.0
    %465 = vmatpush.xpose.msra.mxu0 0.0
    %466 = vmatpush.xpose.msra.mxu0 %v374
    %467 = vmatmul.f32.gmra.mxu0 %v390
    %v468 = vpop.f32.mrf.mxu0
    %v469 = vadd.f32 %v449, %v468
    %470 = vdwg.mxu0
    %v471 = vld [vmem:[%s1 + $0x8] sm:$0xff]
    %v472 = vld [vmem:[%s1 + $0x10] sm:$0x1]
    %v473 = vperm.slane %v472, 0
    %vm474 = vcmask 64512
    %v476 = vsel %vm474, %v469, 0
    %478 = vmatpush.msra.mxu0 0.0
    %479 = vmatpush.msra.mxu0 0.0
    %480 = vmatpush.msra.mxu0 0.0
    %481 = vmatpush.msra.mxu0 0.0
    %482 = vmatpush.msra.mxu0 0.0
    %483 = vmatpush.msra.mxu0 0.0
    %484 = vmatpush.msra.mxu0 0.0
    %485 = vmatpush.msra.mxu0 0.0
    %486 = vmatpush.msra.mxu0 0.0
    %487 = vmatpush.msra.mxu0 0.0
    %488 = vmatpush.msra.mxu0 0.0
    %489 = vmatpush.msra.mxu0 0.0
    %490 = vmatpush.msra.mxu0 0.0
    %491 = vmatpush.msra.mxu0 0.0
    %492 = vmatpush.msra.mxu0 0.0
    %493 = vmatpush.msra.mxu0 %v471
    %494 = vmatmul.f32.gmra.mxu0 %v476
    %v495 = vpop.f32.mrf.mxu0
    %v496 = vadd.f32 %v473, %v495
    %497 = vdwg.mxu0
    %vm498 = vcmask 74752
    %499 = vst.msk [vmem:[#allocation3] sm:$0x3] %vm498, %v496
    // Predicated region
    $region10: #{image_classifier_forward.1} parent=1 // pred_check
      _
    $region11: #{image_classifier_forward.1} parent=1 // pred_check_branch
      %501 = sbr.rel (0) target = $region13
    $region12: #{image_classifier_forward.1} parent=1 // pred_region
      %503 = vsyncadd [#allocation4], 0
      %s505 = sshll.u32 [#allocation3], 4
      %s506 = int_to_ptr.vmem [resolvable:$true] %s505
      %s507 = sshll.u32 %s2, 4
      %s508 = int_to_ptr.hbm [resolvable:$true] %s507
      %510 = dma.vmem_to_hbm [thread:$0]  %s506, 32, %s508, [#allocation4]
    $region13: #{image_classifier_forward.1} parent=1 // pred_fallthru
      _
    // Predicated region
    $region14: #{image_classifier_forward.1} parent=1 // pred_check
      _
    $region15: #{image_classifier_forward.1} parent=1 // pred_check_branch
      %512 = sbr.rel (0) target = $region17
    $region16: #{image_classifier_forward.1} parent=1 // pred_region
      %514 = dma.done [#allocation4], 32
    $region17: #{image_classifier_forward.1} parent=1 // pred_fallthru
      _
    %515 = vsyncpa [#allocation4], 1

</llo_original>
